<compile_context>
chip_gen: v7x
topology: tpu7x:2x2x1
jax: 0.10.0
libtpu: 0.0.40
codegen_flags: <defaults>
</compile_context>

<pallas_src>
from functools import partial

import numpy as np
import jax
import jax.numpy as jnp
from jax.experimental import pallas as pl
from jax.experimental.pallas import tpu as pltpu

# ----- module hyper-parameters (NGPDensityField defaults) ---------------------
NUM_DIM = 3
BASE_RESOLUTION = 16
MAX_RESOLUTION = 128
N_LEVELS = 5
N_FEATURES_PER_LEVEL = 2
LOG2_HASHMAP_SIZE = 17
HASHMAP_SIZE = 1 << LOG2_HASHMAP_SIZE
N_NEURONS = 64
ENC_DIM = N_LEVELS * N_FEATURES_PER_LEVEL  # 10

PER_LEVEL_SCALE = float(
    np.exp((np.log(MAX_RESOLUTION) - np.log(BASE_RESOLUTION)) / (N_LEVELS - 1)))
RESOLUTIONS = [int(round(BASE_RESOLUTION * PER_LEVEL_SCALE ** l))
               for l in range(N_LEVELS)]

# Points per kernel tile (lane axis). Large + multiple of 256 so the HBM-bound
# kernel amortizes pipeline overhead and fills the MXU N dimension; for real
# workloads (N in the millions) the grid has many "parallel" steps so both v7x
# TensorCores stay busy.
TILE_PTS = 1024


# ----- Pallas kernel: fused MLP + density activation + aabb selector ----------
def _density_kernel(pos_ref, enc_ref, w1t_ref, b1_ref, w2_ref, b2m1_ref, out_ref):
    # pos: (3, T) normalized positions, points on the lane axis.
    pos = pos_ref[...]
    # selector = all(0 < p < 1): 3-sublane VPU compare + cheap sublane min-reduce.
    inside = jnp.where(jnp.logical_and(pos > 0.0, pos < 1.0), 1.0, 0.0)
    selector = jnp.min(inside, axis=0, keepdims=True)             # (1, T)
    # hidden layer: (64, 10) @ (10, T) -> (64, T), ReLU
    h = jnp.dot(w1t_ref[...], enc_ref[...],
                preferred_element_type=jnp.float32)
    h = jnp.maximum(h + b1_ref[...], 0.0)                         # (64, T)
    # output layer (64 -> 1): VPU multiply + sublane reduce (avoid N=1 MXU op)
    d = jnp.sum(h * w2_ref[...], axis=0, keepdims=True)           # (1, T)
    # density_activation = trunc_exp(x - 1); forward of trunc_exp is exp.
    # (b2 - 1.0) arrives pre-folded as an SMEM scalar.
    out_ref[...] = jnp.exp(d + b2m1_ref[0]) * selector            # (1, T)


def _mlp_density_pallas(pos_t, enc_t, w1t, b1, w2, b2m1):
    """pos_t: (3, N), enc_t: (10, N) -> density (N,)."""
    n = pos_t.shape[1]
    n_pad = ((n + TILE_PTS - 1) // TILE_PTS) * TILE_PTS
    pad = n_pad - n
    if pad:
        # Padded points have pos == 0 -> selector == 0 -> density 0, sliced off.
        pos_t = jnp.pad(pos_t, ((0, 0), (0, pad)))
        enc_t = jnp.pad(enc_t, ((0, 0), (0, pad)))
    out = pl.pallas_call(
        _density_kernel,
        out_shape=jax.ShapeDtypeStruct((1, n_pad), jnp.float32),
        grid=(n_pad // TILE_PTS,),
        in_specs=[
            pl.BlockSpec((NUM_DIM, TILE_PTS), lambda i: (0, i)),     # pos_t
            pl.BlockSpec((ENC_DIM, TILE_PTS), lambda i: (0, i)),     # enc_t
            pl.BlockSpec((N_NEURONS, ENC_DIM), lambda i: (0, 0)),    # W1^T (resident)
            pl.BlockSpec((N_NEURONS, 1), lambda i: (0, 0)),          # b1   (resident)
            pl.BlockSpec((N_NEURONS, 1), lambda i: (0, 0)),          # w2   (resident)
            pl.BlockSpec(memory_space=pltpu.MemorySpace.SMEM),       # (b2 - 1) scalar
        ],
        out_specs=pl.BlockSpec((1, TILE_PTS), lambda i: (0, i)),     # lane-dense out
        compiler_params=pltpu.CompilerParams(
            dimension_semantics=("parallel",)),
    )(pos_t, enc_t, w1t, b1, w2, b2m1)
    return out[0, :n]


# ----- plain-JAX glue ---------------------------------------------------------
_PRIMES = np.array([1, 2654435761, 805459861], dtype=np.uint32)


def hash_grid_encode_t(xn, tables):
    """Multi-resolution hash-grid encoding (tcnn-style), plain JAX.

    xn: (N, 3) normalized positions. Returns feature-major (n_levels*2, N) f32.
    """
    n = xn.shape[0]
    feats = []
    for level, (table, res) in enumerate(zip(tables, RESOLUTIONS)):
        scaled = xn * (res - 1)
        lo = jnp.floor(scaled)
        frac = scaled - lo
        lo = lo.astype(jnp.int32)
        table_t = table.T                                           # (2, size)
        level_feat = jnp.zeros((N_FEATURES_PER_LEVEL, n), jnp.float32)
        use_hash = res ** 3 > HASHMAP_SIZE
        for corner in range(8):
            offs = np.array([(corner >> d) & 1 for d in range(3)], dtype=np.int32)
            idx3 = lo + jnp.asarray(offs)                           # (N, 3)
            w = jnp.prod(jnp.where(jnp.asarray(offs) == 1, frac, 1.0 - frac),
                         axis=-1)                                   # (N,)
            if use_hash:
                u = idx3.astype(jnp.uint32)
                flat = (u[:, 0] * jnp.uint32(_PRIMES[0])
                        ^ u[:, 1] * jnp.uint32(_PRIMES[1])
                        ^ u[:, 2] * jnp.uint32(_PRIMES[2]))
                flat = (flat % jnp.uint32(HASHMAP_SIZE)).astype(jnp.int32)
            else:
                c = jnp.clip(idx3, 0, res - 1)
                flat = c[:, 0] + c[:, 1] * res + c[:, 2] * res * res
            level_feat = level_feat + w[None, :] * jnp.take(table_t, flat, axis=1)
        feats.append(level_feat)
    return jnp.concatenate(feats, axis=0)                           # (10, N)


def contract_to_unisphere(x, aabb, eps=1e-6):
    aabb_min, aabb_max = aabb[:NUM_DIM], aabb[NUM_DIM:]
    x = (x - aabb_min) / (aabb_max - aabb_min)
    x = x * 2 - 1
    mag = jnp.linalg.norm(x, ord=2, axis=-1, keepdims=True)
    mask = mag > 1
    x = jnp.where(mask, (2 - 1 / mag) * (x / mag), x)
    x = x / 4 + 0.5
    return x


def init_params(key):
    keys = jax.random.split(key, N_LEVELS + 2)
    tables = []
    for l in range(N_LEVELS):
        size = min(RESOLUTIONS[l] ** 3, HASHMAP_SIZE)
        tables.append(jax.random.uniform(keys[l], (size, N_FEATURES_PER_LEVEL),
                                         jnp.float32, minval=-1e-1, maxval=1e-1))
    # Weights are stored in the kernel-friendly (feature-major) layout.
    w1t = jax.random.normal(keys[-2], (N_NEURONS, ENC_DIM), jnp.float32) \
        * (2.0 / ENC_DIM) ** 0.5
    w2 = jax.random.normal(keys[-1], (N_NEURONS, 1), jnp.float32) \
        * (2.0 / N_NEURONS) ** 0.5
    b1 = jnp.zeros((N_NEURONS, 1), jnp.float32)
    b2 = jnp.zeros((1,), jnp.float32)
    return {"tables": tables, "w1t": w1t, "b1": b1, "w2": w2, "b2": b2}


@partial(jax.jit, static_argnames=("unbounded",))
def ngp_density_field(positions, params, aabb, unbounded=False):
    """Forward pass of NGPDensityField. positions: (..., 3) -> density (..., 1)."""
    batch_shape = positions.shape[:-1]
    x = positions.reshape(-1, NUM_DIM).astype(jnp.float32)
    if unbounded:
        xn = contract_to_unisphere(x, aabb)
    else:
        aabb_min, aabb_max = aabb[:NUM_DIM], aabb[NUM_DIM:]
        xn = (x - aabb_min) / (aabb_max - aabb_min)
    enc_t = hash_grid_encode_t(xn, params["tables"])                # (10, N)
    density = _mlp_density_pallas(xn.T, enc_t, params["w1t"], params["b1"],
                                  params["w2"], params["b2"] - 1.0)
    return density.reshape(batch_shape + (1,))


def _reference_density(positions, params, aabb):
    """Pure-JAX reference for correctness checking."""
    x = positions.reshape(-1, NUM_DIM).astype(jnp.float32)
    aabb_min, aabb_max = aabb[:NUM_DIM], aabb[NUM_DIM:]
    xn = (x - aabb_min) / (aabb_max - aabb_min)
    selector = jnp.min(jnp.where((xn > 0.0) & (xn < 1.0), 1.0, 0.0), axis=-1)
    enc_t = hash_grid_encode_t(xn, params["tables"])
    h = jnp.maximum(jnp.dot(params["w1t"], enc_t,
                            precision=jax.lax.Precision.HIGHEST) + params["b1"],
                    0.0)
    d = jnp.sum(h * params["w2"], axis=0) + params["b2"][0]
    dens = jnp.exp(d - 1.0) * selector
    return dens.reshape(positions.shape[:-1] + (1,))


if __name__ == "__main__":
    key = jax.random.PRNGKey(0)
    aabb = jnp.array([-1.0, -1.0, -1.0, 1.0, 1.0, 1.0], dtype=jnp.float32)
    params = init_params(key)

    # small example: 2 rays x 100 samples x 3 coords, some points outside the aabb
    positions = jax.random.uniform(jax.random.fold_in(key, 1), (2, 100, 3),
                                   jnp.float32, minval=-1.2, maxval=1.2)

    density = ngp_density_field(positions, params, aabb)
    density = jax.block_until_ready(density)

    assert density.shape == (2, 100, 1)
    assert bool(jnp.all(jnp.isfinite(density)))
    assert bool(jnp.all(density >= 0.0))

    ref = _reference_density(positions, params, aabb)
    assert bool(jnp.allclose(density, ref, rtol=5e-2, atol=1e-3))

    print("KERNEL_OK")
</pallas_src>

<mosaic_0001>
module attributes {stable_mosaic.version = 11 : i64} {
  func.func @_density_kernel(%arg0: i32, %arg1: memref<3x1024xf32, #tpu.memory_space<vmem>>, %arg2: memref<10x1024xf32, #tpu.memory_space<vmem>>, %arg3: memref<64x10xf32, #tpu.memory_space<vmem>>, %arg4: memref<64x1xf32, #tpu.memory_space<vmem>>, %arg5: memref<64x1xf32, #tpu.memory_space<vmem>>, %arg6: memref<1xf32, #tpu.memory_space<smem>>, %arg7: memref<1x1024xf32, #tpu.memory_space<vmem>>) attributes {dimension_semantics = [#tpu.dimension_semantics<parallel>], iteration_bounds = array<i64: 1>, scalar_prefetch = 0 : i64, scratch_operands = 0 : i64, tpu.core_type = #tpu.core_type<tc>, window_params = [{transform_indices = @transform_0, window_bounds = array<i64: 3, 1024>}, {transform_indices = @transform_1, window_bounds = array<i64: 10, 1024>}, {pipeline_mode = #tpu.pipeline_mode<synchronous>, transform_indices = @transform_2, window_bounds = array<i64: 64, 10>}, {pipeline_mode = #tpu.pipeline_mode<synchronous>, transform_indices = @transform_3, window_bounds = array<i64: 64, 1>}, {pipeline_mode = #tpu.pipeline_mode<synchronous>, transform_indices = @transform_4, window_bounds = array<i64: 64, 1>}, {transform_indices = @transform_5, window_bounds = array<i64: 1>}, {transform_indices = @transform_6, window_bounds = array<i64: 1, 1024>}]} {
    %c0 = arith.constant 0 : index
    %c0_0 = arith.constant 0 : index
    %0 = vector.load %arg1[%c0, %c0_0] : memref<3x1024xf32, #tpu.memory_space<vmem>>, vector<3x1024xf32>
    %cst = arith.constant 0.000000e+00 : f32
    %1 = vector.broadcast %cst : f32 to vector<3x1024xf32>
    %2 = arith.cmpf ogt, %0, %1 : vector<3x1024xf32>
    %cst_1 = arith.constant 1.000000e+00 : f32
    %3 = vector.broadcast %cst_1 : f32 to vector<3x1024xf32>
    %4 = arith.cmpf olt, %0, %3 : vector<3x1024xf32>
    %5 = arith.andi %2, %4 : vector<3x1024xi1>
    %cst_2 = arith.constant 1.000000e+00 : f32
    %cst_3 = arith.constant 0.000000e+00 : f32
    %6 = vector.broadcast %cst_2 : f32 to vector<3x1024xf32>
    %7 = vector.broadcast %cst_3 : f32 to vector<3x1024xf32>
    %8 = arith.select %5, %6, %7 : vector<3x1024xi1>, vector<3x1024xf32>
    %cst_4 = arith.constant dense<0x7F800000> : vector<1024xf32>
    %9 = vector.multi_reduction <minimumf>, %8, %cst_4 [0] : vector<3x1024xf32> to vector<1024xf32>
    %10 = vector.shape_cast %9 : vector<1024xf32> to vector<1x1024xf32>
    %c0_5 = arith.constant 0 : index
    %c0_6 = arith.constant 0 : index
    %11 = vector.load %arg3[%c0_5, %c0_6] : memref<64x10xf32, #tpu.memory_space<vmem>>, vector<64x10xf32>
    %c0_7 = arith.constant 0 : index
    %c0_8 = arith.constant 0 : index
    %12 = vector.load %arg2[%c0_7, %c0_8] : memref<10x1024xf32, #tpu.memory_space<vmem>>, vector<10x1024xf32>
    %cst_9 = arith.constant dense<0.000000e+00> : vector<64x1024xf32>
    %13 = tpu.matmul %11, %12, %cst_9 {dimension_numbers = #tpu.dot_dimension_numbers<[1], [0], [0], [1], [0, 0, 1, 1], [], []>} : vector<64x10xf32>, vector<10x1024xf32>, vector<64x1024xf32> -> vector<64x1024xf32>
    %c0_10 = arith.constant 0 : index
    %c0_11 = arith.constant 0 : index
    %14 = vector.load %arg4[%c0_10, %c0_11] : memref<64x1xf32, #tpu.memory_space<vmem>>, vector<64x1xf32>
    %15 = vector.broadcast %14 : vector<64x1xf32> to vector<64x1024xf32>
    %16 = arith.addf %13, %15 : vector<64x1024xf32>
    %cst_12 = arith.constant 0.000000e+00 : f32
    %17 = vector.broadcast %cst_12 : f32 to vector<64x1024xf32>
    %18 = arith.maximumf %16, %17 : vector<64x1024xf32>
    %c0_13 = arith.constant 0 : index
    %c0_14 = arith.constant 0 : index
    %19 = vector.load %arg5[%c0_13, %c0_14] : memref<64x1xf32, #tpu.memory_space<vmem>>, vector<64x1xf32>
    %20 = vector.broadcast %19 : vector<64x1xf32> to vector<64x1024xf32>
    %21 = arith.mulf %18, %20 : vector<64x1024xf32>
    %cst_15 = arith.constant dense<0.000000e+00> : vector<1024xf32>
    %22 = vector.multi_reduction <add>, %21, %cst_15 [0] : vector<64x1024xf32> to vector<1024xf32>
    %23 = vector.shape_cast %22 : vector<1024xf32> to vector<1x1024xf32>
    %c0_16 = arith.constant 0 : index
    %24 = memref.load %arg6[%c0_16] : memref<1xf32, #tpu.memory_space<smem>>
    %25 = vector.broadcast %24 : f32 to vector<1x1024xf32>
    %26 = arith.addf %23, %25 : vector<1x1024xf32>
    %27 = math.exp %26 : vector<1x1024xf32>
    %28 = arith.mulf %27, %10 : vector<1x1024xf32>
    %c0_17 = arith.constant 0 : index
    %c0_18 = arith.constant 0 : index
    %29 = vector.load %arg7[%c0_17, %c0_18] : memref<1x1024xf32, #tpu.memory_space<vmem>>, vector<1x1024xf32>
    tpu.vector_store %arg7[%c0_17, %c0_18], %28 {strides = array<i32>} : memref<1x1024xf32, #tpu.memory_space<vmem>>, vector<1x1024xf32>,
    return
  }
  func.func @transform_0(%arg0: i32) -> (i32, i32) {
    %c0_i32 = arith.constant 0 : i32
    %c0_i32_0 = arith.constant 0 : i32
    return %c0_i32, %arg0 : i32, i32
  }
  func.func @transform_1(%arg0: i32) -> (i32, i32) {
    %c0_i32 = arith.constant 0 : i32
    %c0_i32_0 = arith.constant 0 : i32
    return %c0_i32, %arg0 : i32, i32
  }
  func.func @transform_2(%arg0: i32) -> (i32, i32) {
    %c0_i32 = arith.constant 0 : i32
    %c0_i32_0 = arith.constant 0 : i32
    %c0_i32_1 = arith.constant 0 : i32
    return %c0_i32, %c0_i32_0 : i32, i32
  }
  func.func @transform_3(%arg0: i32) -> (i32, i32) {
    %c0_i32 = arith.constant 0 : i32
    %c0_i32_0 = arith.constant 0 : i32
    %c0_i32_1 = arith.constant 0 : i32
    return %c0_i32, %c0_i32_0 : i32, i32
  }
  func.func @transform_4(%arg0: i32) -> (i32, i32) {
    %c0_i32 = arith.constant 0 : i32
    %c0_i32_0 = arith.constant 0 : i32
    %c0_i32_1 = arith.constant 0 : i32
    return %c0_i32, %c0_i32_0 : i32, i32
  }
  func.func @transform_5(%arg0: i32) -> i32 {
    %c0_i32 = arith.constant 0 : i32
    %c0_i32_0 = arith.constant 0 : i32
    return %c0_i32 : i32
  }
  func.func @transform_6(%arg0: i32) -> (i32, i32) {
    %c0_i32 = arith.constant 0 : i32
    %c0_i32_0 = arith.constant 0 : i32
    return %c0_i32, %arg0 : i32, i32
  }
}

</mosaic_0001>

<llo_original>
// kernel: mul.333
$region0: #{mul.333}
  %s0 = inlined_call_operand.vmem [shape: f32[2,100], index: 0, kind: input, shape index: {}]
  %s1 = inlined_call_operand.vmem [shape: f32[200], index: 1, kind: output, shape index: {}]
  $region1: #{mul.333} parent=0
    #allocation0 [shape = 'u8[4096]{0}', space=vmem, size = 0x1000, scoped, tag = 'scoped mem for output reshape']
    #allocation1 [shape = 'u8[4096]{0}', space=vmem, size = 0x1000, scoped, tag = 'scoped mem for input reshape']
    %s3 = sshllo.u32 0, 2
    %v4 = vld [vmem:[%s0] sm:%s3]
    %5 = vst [vmem:[#allocation1] sm:%s3] %v4
    %v6 = vld [vmem:[#allocation1] sm:$0x1]
    %vm7 = vcmask 818176
    %8 = vst.msk [vmem:[#allocation0] sm:$0x1] %vm7, %v6
    %s9 = scalar_lea.vmem [#allocation1], 1
    %v10 = vld [vmem:[%s9] sm:$0x1]
    %s11 = scalar_lea.vmem [#allocation1], 1
    %v12 = vld [vmem:[%s11] sm:$0x1]
    %vm13 = vcmask 228352
    %v14 = vsel %vm13, %v12, %v10
    %15 = vrot.lane.b32.xlu0 %v14, 100
    %v16 = vpop.permute.xlu0 %15
    %vm17 = vcmask 588800
    %s18 = scalar_lea.vmem [#allocation0], 1
    %19 = vst.msk [vmem:[%s18] sm:$0x1] %vm17, %v16
    %vm20 = vcmask 1048352
    %21 = vst.msk [vmem:[#allocation0] sm:$0x1] %vm20, %v16
    %s23 = sshllo.u32 0, 2
    %v25 = vld [vmem:[#allocation0] sm:%s23]
    %s26 = sshllo.u32 0, 2
    %27 = vst [vmem:[%s1] sm:%s26] %v25

// kernel: squeeze.241
$region0: #{squeeze.241}
  %s0 = inlined_call_operand.vmem [shape: f32[200], index: 0, kind: input, shape index: {}]
  %s1 = inlined_call_operand.hbm [shape: f32[2,100,1], index: 1, kind: output, shape index: {}]
  $region1: #{squeeze.241} parent=0
    #allocation0 [shape = 'u8[1024]{0}', space=vmem, size = 0x400, scoped, tag = 'operand span for operand 1']
    #allocation1 [shape = 's32[1]{0}', space=sflag, size = 0x4, scoped, tag = 'scoped memory for squeeze.241']
    #allocation2 [shape = 'u8[4096]{0}', space=vmem, size = 0x1000, scoped, tag = 'scoped mem for output reshape']
    #allocation3 [shape = 'u8[4096]{0}', space=vmem, size = 0x1000, scoped, tag = 'scoped mem for input reshape']
    %2 = vsyncpa [#allocation1], 0
    %s4 = sshllo.u32 0, 2
    %v5 = vld [vmem:[%s0] sm:%s4]
    %6 = vst [vmem:[#allocation3] sm:%s4] %v5
    %v7 = vld [vmem:[#allocation3] sm:$0x1]
    %vm8 = vcmask 818176
    %9 = vst.msk [vmem:[#allocation2] sm:$0x1] %vm8, %v7
    %v10 = vld [vmem:[#allocation3] sm:$0x1]
    %s11 = scalar_lea.vmem [#allocation3], 1
    %v12 = vld [vmem:[%s11] sm:$0x1]
    %vm13 = vcmask 818176
    %v14 = vsel %vm13, %v12, %v10
    %15 = vrot.lane.b32.xlu0 %v14, 28
    %v16 = vpop.permute.xlu0 %15
    %vm17 = vcmask 228352
    %s18 = scalar_lea.vmem [#allocation2], 1
    %19 = vst.msk [vmem:[%s18] sm:$0x1] %vm17, %v16
    %vm20 = vcmask 818400
    %s21 = scalar_lea.vmem [#allocation2], 1
    %22 = vst.msk [vmem:[%s21] sm:$0x1] %vm20, %v16
    %s24 = sshllo.u32 0, 2
    %v26 = vld [vmem:[#allocation2] sm:%s24]
    %s27 = sshllo.u32 0, 2
    %28 = vst [vmem:[#allocation0] sm:%s27] %v26
    %s30 = ssub.s32 32, 32
    %31 = vsyncadd [#allocation1], %s30
    %s33 = sshll.u32 [#allocation0], 4
    %s34 = int_to_ptr.vmem [resolvable:$true] %s33
    %36 = dma.vmem_to_hbm [thread:$0]  %s34, 32, %s1, [#allocation1]
    %37 = dma.done [#allocation1], 32
    %38 = vsyncpa [#allocation1], 1

// kernel: ngp_density_field.1
$region0: #{ngp_density_field.1}
  #allocation0 [shape = 'u32[]', space=smem, size = 0x4, offset = 0x4, fixed_abs, tag = 'smem constant byte address 0x4 - core index']
  #allocation1 [shape = 'u32[144,128]{1,0:T(1,128)}', space=vmem, size = 0x12000, scoped, tag = 'internal scratch']
  #allocation2 [shape = 'f32[1]{0:T(128)S(6)}', space=smem, size = 0x200, scoped, tag = 'scoped memory for ngp_density_field.1']
  %s0 = inlined_call_operand.vmem [shape: f32[3,1024], index: 0, kind: input, shape index: {}]
  %s1 = inlined_call_operand.vmem [shape: f32[10,1024], index: 1, kind: input, shape index: {}]
  %s2 = inlined_call_operand.vmem [shape: f32[64,10], index: 2, kind: input, shape index: {}]
  %s3 = inlined_call_operand.vmem [shape: f32[64,1], index: 3, kind: input, shape index: {}]
  %s4 = inlined_call_operand.vmem [shape: f32[64,1], index: 4, kind: input, shape index: {}]
  %s5 = inlined_call_operand.<no memory space> [shape: f32[1], index: 5, kind: input, shape index: {}]
  %s6 = inlined_call_operand.vmem [shape: f32[1,1024], index: 6, kind: output, shape index: {}]
  %s7 = sld [smem:[#allocation0]]
  $region34: #{ngp_density_field.1} parent=0
    _
  %s9 = ssub.s32 1, %s7
  %s10 = scalar_select 0, %s9, %s7
  %11 = sst [smem:[#allocation2]] %s5
  // Predicated region
  $region2: #{ngp_density_field.1} parent=0 // pred_check
    _
  $region3: #{ngp_density_field.1} parent=0 // pred_check_branch
    %13 = sbr.rel (0) target = $region5
  $region4: #{ngp_density_field.1} parent=0 // pred_region
    _
  $region5: #{ngp_density_field.1} parent=0 // pred_fallthru
    _
  // Predicated region
  $region6: #{ngp_density_field.1} parent=0 // pred_check
    _
  $region7: #{ngp_density_field.1} parent=0 // pred_check_branch
    %15 = sbr.rel (0) target = $region9
  $region8: #{ngp_density_field.1} parent=0 // pred_region
    _
  $region9: #{ngp_density_field.1} parent=0 // pred_fallthru
    _
  // Predicated region
  $region10: #{ngp_density_field.1} parent=0 // pred_check
    _
  $region11: #{ngp_density_field.1} parent=0 // pred_check_branch
    %17 = sbr.rel (0) target = $region13
  $region12: #{ngp_density_field.1} parent=0 // pred_region
    _
  $region13: #{ngp_density_field.1} parent=0 // pred_fallthru
    _
  // Predicated region
  $region14: #{ngp_density_field.1} parent=0 // pred_check
    _
  $region15: #{ngp_density_field.1} parent=0 // pred_check_branch
    %19 = sbr.rel (0) target = $region17
  $region16: #{ngp_density_field.1} parent=0 // pred_region
    _
  $region17: #{ngp_density_field.1} parent=0 // pred_fallthru
    _
  // Predicated region
  $region18: #{ngp_density_field.1} parent=0 // pred_check
    _
  $region19: #{ngp_density_field.1} parent=0 // pred_check_branch
    %21 = sbr.rel (0) target = $region21
  $region20: #{ngp_density_field.1} parent=0 // pred_region
    _
  $region21: #{ngp_density_field.1} parent=0 // pred_fallthru
    _
  // Predicated region
  $region22: #{ngp_density_field.1} parent=0 // pred_check
    _
  $region23: #{ngp_density_field.1} parent=0 // pred_check_branch
    %23 = sbr.rel (0) target = $region25
  $region24: #{ngp_density_field.1} parent=0 // pred_region
    _
  $region25: #{ngp_density_field.1} parent=0 // pred_fallthru
    _
  %v24 = vld [vmem:[%s0] sm:$0x77]
  %v25 = vld [vmem:[%s0 + $0x8] sm:$0x77]
  %v26 = vld [vmem:[%s0 + $0x10] sm:$0x77]
  %v27 = vld [vmem:[%s0 + $0x18] sm:$0x77]
  %vm28 = vcmp.gt.f32.partialorder %v24, 0.0
  %vm29 = vcmp.gt.f32.partialorder %v25, 0.0
  %vm30 = vcmp.gt.f32.partialorder %v26, 0.0
  %vm31 = vcmp.gt.f32.partialorder %v27, 0.0
  %vm32 = vcmp.lt.f32.partialorder %v24, 1.0
  %vm33 = vcmp.lt.f32.partialorder %v25, 1.0
  %vm34 = vcmp.lt.f32.partialorder %v26, 1.0
  %vm35 = vcmp.lt.f32.partialorder %v27, 1.0
  %vm36 = vmand %vm28, %vm32
  %vm37 = vmand %vm29, %vm33
  %vm38 = vmand %vm30, %vm34
  %vm39 = vmand %vm31, %vm35
  %v40 = vsel %vm36, 1.0, 0.0
  %v41 = vsel %vm37, 1.0, 0.0
  %v42 = vsel %vm38, 1.0, 0.0
  %v43 = vsel %vm39, 1.0, 0.0
  %v48 = vcombine.high %v40, %v40
  %v49 = vcombine.high %v41, %v41
  %v50 = vcombine.high %v42, %v42
  %v51 = vcombine.high %v43, %v43
  %vm56 = vcmask 1042432
  %v57 = vsel %vm56, %v40, inf
  %v58 = vrot.slane %v57, 4
  %v59 = vmin.f32 %v57, %v58
  %v60 = vrot.slane %v59, 2
  %v61 = vmin.f32 %v59, %v60
  %v62 = vrot.slane %v61, 1
  %v63 = vmin.f32 %v61, %v62
  %v64 = vsel %vm56, %v48, inf
  %v65 = vrot.slane %v64, 4
  %v66 = vmin.f32 %v64, %v65
  %v67 = vrot.slane %v66, 2
  %v68 = vmin.f32 %v66, %v67
  %v69 = vrot.slane %v68, 1
  %v70 = vmin.f32 %v68, %v69
  %v71 = vsel %vm56, %v41, inf
  %v72 = vrot.slane %v71, 4
  %v73 = vmin.f32 %v71, %v72
  %v74 = vrot.slane %v73, 2
  %v75 = vmin.f32 %v73, %v74
  %v76 = vrot.slane %v75, 1
  %v77 = vmin.f32 %v75, %v76
  %v78 = vsel %vm56, %v49, inf
  %v79 = vrot.slane %v78, 4
  %v80 = vmin.f32 %v78, %v79
  %v81 = vrot.slane %v80, 2
  %v82 = vmin.f32 %v80, %v81
  %v83 = vrot.slane %v82, 1
  %v84 = vmin.f32 %v82, %v83
  %v85 = vsel %vm56, %v42, inf
  %v86 = vrot.slane %v85, 4
  %v87 = vmin.f32 %v85, %v86
  %v88 = vrot.slane %v87, 2
  %v89 = vmin.f32 %v87, %v88
  %v90 = vrot.slane %v89, 1
  %v91 = vmin.f32 %v89, %v90
  %v92 = vsel %vm56, %v50, inf
  %v93 = vrot.slane %v92, 4
  %v94 = vmin.f32 %v92, %v93
  %v95 = vrot.slane %v94, 2
  %v96 = vmin.f32 %v94, %v95
  %v97 = vrot.slane %v96, 1
  %v98 = vmin.f32 %v96, %v97
  %v99 = vsel %vm56, %v43, inf
  %v100 = vrot.slane %v99, 4
  %v101 = vmin.f32 %v99, %v100
  %v102 = vrot.slane %v101, 2
  %v103 = vmin.f32 %v101, %v102
  %v104 = vrot.slane %v103, 1
  %v105 = vmin.f32 %v103, %v104
  %v106 = vsel %vm56, %v51, inf
  %v107 = vrot.slane %v106, 4
  %v108 = vmin.f32 %v106, %v107
  %v109 = vrot.slane %v108, 2
  %v110 = vmin.f32 %v108, %v109
  %v111 = vrot.slane %v110, 1
  %v112 = vmin.f32 %v110, %v111
  %v113 = vld [vmem:[%s2] sm:$0xff]
  %v114 = vld [vmem:[%s2 + $0x8] sm:$0xff]
  %v115 = vld [vmem:[%s2 + $0x10] sm:$0xff]
  %v116 = vld [vmem:[%s2 + $0x18] sm:$0xff]
  %v117 = vld [vmem:[%s2 + $0x20] sm:$0xff]
  %v118 = vld [vmem:[%s2 + $0x28] sm:$0xff]
  %v119 = vld [vmem:[%s2 + $0x30] sm:$0xff]
  %v120 = vld [vmem:[%s2 + $0x38] sm:$0xff]
  %v121 = vld [vmem:[%s1] sm:$0xff]
  %v122 = vld [vmem:[%s1 + $0x8] sm:$0xff]
  %v123 = vld [vmem:[%s1 + $0x10] sm:$0xff]
  %v124 = vld [vmem:[%s1 + $0x18] sm:$0xff]
  %v125 = vld [vmem:[%s1 + $0x20] sm:$0xff]
  %v126 = vld [vmem:[%s1 + $0x28] sm:$0xff]
  %v127 = vld [vmem:[%s1 + $0x30] sm:$0xff]
  %v128 = vld [vmem:[%s1 + $0x38] sm:$0xff]
  %v129 = vld [vmem:[%s1 + $0x40] sm:$0x3]
  %v130 = vld [vmem:[%s1 + $0x48] sm:$0x3]
  %v131 = vld [vmem:[%s1 + $0x50] sm:$0x3]
  %v132 = vld [vmem:[%s1 + $0x58] sm:$0x3]
  %v133 = vld [vmem:[%s1 + $0x60] sm:$0x3]
  %v134 = vld [vmem:[%s1 + $0x68] sm:$0x3]
  %v135 = vld [vmem:[%s1 + $0x70] sm:$0x3]
  %v136 = vld [vmem:[%s1 + $0x78] sm:$0x3]
  %v137 = vld [vmem:[%s3] sm:$0xff]
  %v138 = vld [vmem:[%s3 + $0x8] sm:$0xff]
  %v139 = vld [vmem:[%s3 + $0x10] sm:$0xff]
  %v140 = vld [vmem:[%s3 + $0x18] sm:$0xff]
  %v141 = vld [vmem:[%s3 + $0x20] sm:$0xff]
  %v142 = vld [vmem:[%s3 + $0x28] sm:$0xff]
  %v143 = vld [vmem:[%s3 + $0x30] sm:$0xff]
  %v144 = vld [vmem:[%s3 + $0x38] sm:$0xff]
  %146 = vset.pattern.permute.xlu0 0
  %147 = vperm.xlu0 %146, %v137
  %v148 = vpop.permute.xlu0 %147
  %151 = vset.pattern.permute.xlu0 0
  %152 = vperm.xlu0 %151, %v138
  %v153 = vpop.permute.xlu0 %152
  %156 = vset.pattern.permute.xlu0 0
  %157 = vperm.xlu0 %156, %v139
  %v158 = vpop.permute.xlu0 %157
  %161 = vset.pattern.permute.xlu0 0
  %162 = vperm.xlu0 %161, %v140
  %v163 = vpop.permute.xlu0 %162
  %166 = vset.pattern.permute.xlu0 0
  %167 = vperm.xlu0 %166, %v141
  %v168 = vpop.permute.xlu0 %167
  %171 = vset.pattern.permute.xlu0 0
  %172 = vperm.xlu0 %171, %v142
  %v173 = vpop.permute.xlu0 %172
  %176 = vset.pattern.permute.xlu0 0
  %177 = vperm.xlu0 %176, %v143
  %v178 = vpop.permute.xlu0 %177
  %181 = vset.pattern.permute.xlu0 0
  %182 = vperm.xlu0 %181, %v144
  %v183 = vpop.permute.xlu0 %182
  %vm185 = vcmask 80896
  %v187 = vsel %vm185, %v113, 0
  %v190 = vsel %vm185, %v114, 0
  %v193 = vsel %vm185, %v115, 0
  %v196 = vsel %vm185, %v116, 0
  %v199 = vsel %vm185, %v117, 0
  %v202 = vsel %vm185, %v118, 0
  %v205 = vsel %vm185, %v119, 0
  %v208 = vsel %vm185, %v120, 0
  %vm210 = vcmask 1041408
  %v212 = vsel %vm210, %v129, 0
  %v215 = vsel %vm210, %v130, 0
  %v218 = vsel %vm210, %v131, 0
  %v221 = vsel %vm210, %v132, 0
  %v224 = vsel %vm210, %v133, 0
  %v227 = vsel %vm210, %v134, 0
  %v230 = vsel %vm210, %v135, 0
  %v233 = vsel %vm210, %v136, 0
  %235 = vmatprep.subr.mxu0 %v122
  %236 = vmatpush1.msra.mxu0 %v121
  %237 = vmatprep.subr.mxu0 %v215
  %238 = vmatpush1.msra.mxu0 %v212
  %239 = vmatprep.subr.mxu0 0.0
  %240 = vmatpush1.msra.mxu0 0.0
  %241 = vmatprep.subr.mxu0 0.0
  %242 = vmatpush1.msra.mxu0 0.0
  %243 = vmatprep.subr.mxu0 0.0
  %244 = vmatpush1.msra.mxu0 0.0
  %245 = vmatprep.subr.mxu0 0.0
  %246 = vmatpush1.msra.mxu0 0.0
  %247 = vmatprep.subr.mxu0 0.0
  %248 = vmatpush1.msra.mxu0 0.0
  %249 = vmatprep.subr.mxu0 0.0
  %250 = vmatpush1.msra.mxu0 0.0
  %251 = vmatprep.subr.mxu0 0.0
  %252 = vmatpush1.msra.mxu0 0.0
  %253 = vmatprep.subr.mxu0 0.0
  %254 = vmatpush1.msra.mxu0 0.0
  %255 = vmatprep.subr.mxu0 0.0
  %256 = vmatpush1.msra.mxu0 0.0
  %257 = vmatprep.subr.mxu0 0.0
  %258 = vmatpush1.msra.mxu0 0.0
  %259 = vmatprep.subr.mxu0 0.0
  %260 = vmatpush1.msra.mxu0 0.0
  %261 = vmatprep.subr.mxu0 0.0
  %262 = vmatpush1.msra.mxu0 0.0
  %263 = vmatprep.subr.mxu0 0.0
  %264 = vmatpush1.msra.mxu0 0.0
  %265 = vmatprep.subr.mxu0 0.0
  %266 = vmatpush1.msra.mxu0 0.0
  %267 = vmatprep.subr.mxu0 0.0
  %268 = vmatpush1.msra.mxu0 0.0
  %269 = vmatprep.subr.mxu0 0.0
  %270 = vmatpush1.msra.mxu0 0.0
  %271 = vmatprep.subr.mxu0 0.0
  %272 = vmatpush1.msra.mxu0 0.0
  %273 = vmatprep.subr.mxu0 0.0
  %274 = vmatpush1.msra.mxu0 0.0
  %275 = vmatprep.subr.mxu0 0.0
  %276 = vmatpush1.msra.mxu0 0.0
  %277 = vmatprep.subr.mxu0 0.0
  %278 = vmatpush1.msra.mxu0 0.0
  %279 = vmatprep.subr.mxu0 0.0
  %280 = vmatpush1.msra.mxu0 0.0
  %281 = vmatprep.subr.mxu0 0.0
  %282 = vmatpush1.msra.mxu0 0.0
  %283 = vmatprep.subr.mxu0 0.0
  %284 = vmatpush1.msra.mxu0 0.0
  %285 = vmatprep.subr.mxu0 0.0
  %286 = vmatpush1.msra.mxu0 0.0
  %287 = vmatprep.subr.mxu0 0.0
  %288 = vmatpush1.msra.mxu0 0.0
  %289 = vmatprep.subr.mxu0 0.0
  %290 = vmatpush1.msra.mxu0 0.0
  %291 = vmatprep.subr.mxu0 0.0
  %292 = vmatpush1.msra.mxu0 0.0
  %293 = vmatprep.subr.mxu0 0.0
  %294 = vmatpush1.msra.mxu0 0.0
  %295 = vmatprep.subr.mxu0 0.0
  %296 = vmatpush1.msra.mxu0 0.0
  %297 = vmatprep.subr.mxu0 0.0
  %298 = vmatpush1.msra.mxu0 0.0
  %299 = vmatprep.mubr.f32.mxu0 0.0
  %300 = vmatmul.mubr.f32.gmra.mrb[0].mxu0 %v187
  %v301 = vpop.f32.mrb[0].mxu0
  %v302 = vadd.f32 %v148, %v301
  %v303 = vpop.f32.mrb[0].mxu0
  %v304 = vadd.f32 %v148, %v303
  %305 = vmatprep.mubr.f32.mxu0 0.0
  %306 = vmatmul.mubr.f32.gmra.mrb[0].mxu0 %v190
  %v307 = vpop.f32.mrb[0].mxu0
  %v308 = vadd.f32 %v153, %v307
  %v309 = vpop.f32.mrb[0].mxu0
  %v310 = vadd.f32 %v153, %v309
  %311 = vmatprep.mubr.f32.mxu0 0.0
  %312 = vmatmul.mubr.f32.gmra.mrb[0].mxu0 %v193
  %v313 = vpop.f32.mrb[0].mxu0
  %v314 = vadd.f32 %v158, %v313
  %v315 = vpop.f32.mrb[0].mxu0
  %v316 = vadd.f32 %v158, %v315
  %317 = vmatprep.mubr.f32.mxu0 0.0
  %318 = vmatmul.mubr.f32.gmra.mrb[0].mxu0 %v196
  %v319 = vpop.f32.mrb[0].mxu0
  %v320 = vadd.f32 %v163, %v319
  %v321 = vpop.f32.mrb[0].mxu0
  %v322 = vadd.f32 %v163, %v321
  %323 = vmatprep.mubr.f32.mxu0 0.0
  %324 = vmatmul.mubr.f32.gmra.mrb[0].mxu0 %v199
  %v325 = vpop.f32.mrb[0].mxu0
  %v326 = vadd.f32 %v168, %v325
  %v327 = vpop.f32.mrb[0].mxu0
  %v328 = vadd.f32 %v168, %v327
  %329 = vmatprep.mubr.f32.mxu0 0.0
  %330 = vmatmul.mubr.f32.gmra.mrb[0].mxu0 %v202
  %v331 = vpop.f32.mrb[0].mxu0
  %v332 = vadd.f32 %v173, %v331
  %v333 = vpop.f32.mrb[0].mxu0
  %v334 = vadd.f32 %v173, %v333
  %335 = vmatprep.mubr.f32.mxu0 0.0
  %336 = vmatmul.mubr.f32.gmra.mrb[0].mxu0 %v205
  %v337 = vpop.f32.mrb[0].mxu0
  %v338 = vadd.f32 %v178, %v337
  %v339 = vpop.f32.mrb[0].mxu0
  %v340 = vadd.f32 %v178, %v339
  %341 = vmatprep.mubr.f32.mxu0 0.0
  %342 = vmatmul.mubr.f32.gmra.mrb[0].mxu0 %v208
  %v343 = vpop.f32.mrb[0].mxu0
  %v344 = vadd.f32 %v183, %v343
  %v345 = vpop.f32.mrb[0].mxu0
  %v346 = vadd.f32 %v183, %v345
  %347 = vdwg.mxu0
  %348 = vmatprep.subr.mxu0 %v124
  %349 = vmatpush1.msra.mxu0 %v123
  %350 = vmatprep.subr.mxu0 %v221
  %351 = vmatpush1.msra.mxu0 %v218
  %352 = vmatprep.subr.mxu0 0.0
  %353 = vmatpush1.msra.mxu0 0.0
  %354 = vmatprep.subr.mxu0 0.0
  %355 = vmatpush1.msra.mxu0 0.0
  %356 = vmatprep.subr.mxu0 0.0
  %357 = vmatpush1.msra.mxu0 0.0
  %358 = vmatprep.subr.mxu0 0.0
  %359 = vmatpush1.msra.mxu0 0.0
  %360 = vmatprep.subr.mxu0 0.0
  %361 = vmatpush1.msra.mxu0 0.0
  %362 = vmatprep.subr.mxu0 0.0
  %363 = vmatpush1.msra.mxu0 0.0
  %364 = vmatprep.subr.mxu0 0.0
  %365 = vmatpush1.msra.mxu0 0.0
  %366 = vmatprep.subr.mxu0 0.0
  %367 = vmatpush1.msra.mxu0 0.0
  %368 = vmatprep.subr.mxu0 0.0
  %369 = vmatpush1.msra.mxu0 0.0
  %370 = vmatprep.subr.mxu0 0.0
  %371 = vmatpush1.msra.mxu0 0.0
  %372 = vmatprep.subr.mxu0 0.0
  %373 = vmatpush1.msra.mxu0 0.0
  %374 = vmatprep.subr.mxu0 0.0
  %375 = vmatpush1.msra.mxu0 0.0
  %376 = vmatprep.subr.mxu0 0.0
  %377 = vmatpush1.msra.mxu0 0.0
  %378 = vmatprep.subr.mxu0 0.0
  %379 = vmatpush1.msra.mxu0 0.0
  %380 = vmatprep.subr.mxu0 0.0
  %381 = vmatpush1.msra.mxu0 0.0
  %382 = vmatprep.subr.mxu0 0.0
  %383 = vmatpush1.msra.mxu0 0.0
  %384 = vmatprep.subr.mxu0 0.0
  %385 = vmatpush1.msra.mxu0 0.0
  %386 = vmatprep.subr.mxu0 0.0
  %387 = vmatpush1.msra.mxu0 0.0
  %388 = vmatprep.subr.mxu0 0.0
  %389 = vmatpush1.msra.mxu0 0.0
  %390 = vmatprep.subr.mxu0 0.0
  %391 = vmatpush1.msra.mxu0 0.0
  %392 = vmatprep.subr.mxu0 0.0
  %393 = vmatpush1.msra.mxu0 0.0
  %394 = vmatprep.subr.mxu0 0.0
  %395 = vmatpush1.msra.mxu0 0.0
  %396 = vmatprep.subr.mxu0 0.0
  %397 = vmatpush1.msra.mxu0 0.0
  %398 = vmatprep.subr.mxu0 0.0
  %399 = vmatpush1.msra.mxu0 0.0
  %400 = vmatprep.subr.mxu0 0.0
  %401 = vmatpush1.msra.mxu0 0.0
  %402 = vmatprep.subr.mxu0 0.0
  %403 = vmatpush1.msra.mxu0 0.0
  %404 = vmatprep.subr.mxu0 0.0
  %405 = vmatpush1.msra.mxu0 0.0
  %406 = vmatprep.subr.mxu0 0.0
  %407 = vmatpush1.msra.mxu0 0.0
  %408 = vmatprep.subr.mxu0 0.0
  %409 = vmatpush1.msra.mxu0 0.0
  %410 = vmatprep.subr.mxu0 0.0
  %411 = vmatpush1.msra.mxu0 0.0
  %412 = vmatprep.mubr.f32.mxu0 0.0
  %413 = vmatmul.mubr.f32.gmra.mrb[0].mxu0 %v187
  %v414 = vpop.f32.mrb[0].mxu0
  %v415 = vadd.f32 %v148, %v414
  %v416 = vpop.f32.mrb[0].mxu0
  %v417 = vadd.f32 %v148, %v416
  %418 = vmatprep.mubr.f32.mxu0 0.0
  %419 = vmatmul.mubr.f32.gmra.mrb[0].mxu0 %v190
  %v420 = vpop.f32.mrb[0].mxu0
  %v421 = vadd.f32 %v153, %v420
  %v422 = vpop.f32.mrb[0].mxu0
  %v423 = vadd.f32 %v153, %v422
  %424 = vmatprep.mubr.f32.mxu0 0.0
  %425 = vmatmul.mubr.f32.gmra.mrb[0].mxu0 %v193
  %v426 = vpop.f32.mrb[0].mxu0
  %v427 = vadd.f32 %v158, %v426
  %v428 = vpop.f32.mrb[0].mxu0
  %v429 = vadd.f32 %v158, %v428
  %430 = vmatprep.mubr.f32.mxu0 0.0
  %431 = vmatmul.mubr.f32.gmra.mrb[0].mxu0 %v196
  %v432 = vpop.f32.mrb[0].mxu0
  %v433 = vadd.f32 %v163, %v432
  %v434 = vpop.f32.mrb[0].mxu0
  %v435 = vadd.f32 %v163, %v434
  %436 = vmatprep.mubr.f32.mxu0 0.0
  %437 = vmatmul.mubr.f32.gmra.mrb[0].mxu0 %v199
  %v438 = vpop.f32.mrb[0].mxu0
  %v439 = vadd.f32 %v168, %v438
  %v440 = vpop.f32.mrb[0].mxu0
  %v441 = vadd.f32 %v168, %v440
  %442 = vmatprep.mubr.f32.mxu0 0.0
  %443 = vmatmul.mubr.f32.gmra.mrb[0].mxu0 %v202
  %v444 = vpop.f32.mrb[0].mxu0
  %v445 = vadd.f32 %v173, %v444
  %v446 = vpop.f32.mrb[0].mxu0
  %v447 = vadd.f32 %v173, %v446
  %448 = vmatprep.mubr.f32.mxu0 0.0
  %449 = vmatmul.mubr.f32.gmra.mrb[0].mxu0 %v205
  %v450 = vpop.f32.mrb[0].mxu0
  %v451 = vadd.f32 %v178, %v450
  %v452 = vpop.f32.mrb[0].mxu0
  %v453 = vadd.f32 %v178, %v452
  %454 = vmatprep.mubr.f32.mxu0 0.0
  %455 = vmatmul.mubr.f32.gmra.mrb[0].mxu0 %v208
  %v456 = vpop.f32.mrb[0].mxu0
  %v457 = vadd.f32 %v183, %v456
  %v458 = vpop.f32.mrb[0].mxu0
  %v459 = vadd.f32 %v183, %v458
  %460 = vdwg.mxu0
  %461 = vmatprep.subr.mxu0 %v126
  %462 = vmatpush1.msra.mxu0 %v125
  %463 = vmatprep.subr.mxu0 %v227
  %464 = vmatpush1.msra.mxu0 %v224
  %465 = vmatprep.subr.mxu0 0.0
  %466 = vmatpush1.msra.mxu0 0.0
  %467 = vmatprep.subr.mxu0 0.0
  %468 = vmatpush1.msra.mxu0 0.0
  %469 = vmatprep.subr.mxu0 0.0
  %470 = vmatpush1.msra.mxu0 0.0
  %471 = vmatprep.subr.mxu0 0.0
  %472 = vmatpush1.msra.mxu0 0.0
  %473 = vmatprep.subr.mxu0 0.0
  %474 = vmatpush1.msra.mxu0 0.0
  %475 = vmatprep.subr.mxu0 0.0
  %476 = vmatpush1.msra.mxu0 0.0
  %477 = vmatprep.subr.mxu0 0.0
  %478 = vmatpush1.msra.mxu0 0.0
  %479 = vmatprep.subr.mxu0 0.0
  %480 = vmatpush1.msra.mxu0 0.0
  %481 = vmatprep.subr.mxu0 0.0
  %482 = vmatpush1.msra.mxu0 0.0
  %483 = vmatprep.subr.mxu0 0.0
  %484 = vmatpush1.msra.mxu0 0.0
  %485 = vmatprep.subr.mxu0 0.0
  %486 = vmatpush1.msra.mxu0 0.0
  %487 = vmatprep.subr.mxu0 0.0
  %488 = vmatpush1.msra.mxu0 0.0
  %489 = vmatprep.subr.mxu0 0.0
  %490 = vmatpush1.msra.mxu0 0.0
  %491 = vmatprep.subr.mxu0 0.0
  %492 = vmatpush1.msra.mxu0 0.0
  %493 = vmatprep.subr.mxu0 0.0
  %494 = vmatpush1.msra.mxu0 0.0
  %495 = vmatprep.subr.mxu0 0.0
  %496 = vmatpush1.msra.mxu0 0.0
  %497 = vmatprep.subr.mxu0 0.0
  %498 = vmatpush1.msra.mxu0 0.0
  %499 = vmatprep.subr.mxu0 0.0
  %500 = vmatpush1.msra.mxu0 0.0
  %501 = vmatprep.subr.mxu0 0.0
  %502 = vmatpush1.msra.mxu0 0.0
  %503 = vmatprep.subr.mxu0 0.0
  %504 = vmatpush1.msra.mxu0 0.0
  %505 = vmatprep.subr.mxu0 0.0
  %506 = vmatpush1.msra.mxu0 0.0
  %507 = vmatprep.subr.mxu0 0.0
  %508 = vmatpush1.msra.mxu0 0.0
  %509 = vmatprep.subr.mxu0 0.0
  %510 = vmatpush1.msra.mxu0 0.0
  %511 = vmatprep.subr.mxu0 0.0
  %512 = vmatpush1.msra.mxu0 0.0
  %513 = vmatprep.subr.mxu0 0.0
  %514 = vmatpush1.msra.mxu0 0.0
  %515 = vmatprep.subr.mxu0 0.0
  %516 = vmatpush1.msra.mxu0 0.0
  %517 = vmatprep.subr.mxu0 0.0
  %518 = vmatpush1.msra.mxu0 0.0
  %519 = vmatprep.subr.mxu0 0.0
  %520 = vmatpush1.msra.mxu0 0.0
  %521 = vmatprep.subr.mxu0 0.0
  %522 = vmatpush1.msra.mxu0 0.0
  %523 = vmatprep.subr.mxu0 0.0
  %524 = vmatpush1.msra.mxu0 0.0
  %525 = vmatprep.mubr.f32.mxu0 0.0
  %526 = vmatmul.mubr.f32.gmra.mrb[0].mxu0 %v187
  %v527 = vpop.f32.mrb[0].mxu0
  %v528 = vadd.f32 %v148, %v527
  %v529 = vpop.f32.mrb[0].mxu0
  %v530 = vadd.f32 %v148, %v529
  %531 = vmatprep.mubr.f32.mxu0 0.0
  %532 = vmatmul.mubr.f32.gmra.mrb[0].mxu0 %v190
  %v533 = vpop.f32.mrb[0].mxu0
  %v534 = vadd.f32 %v153, %v533
  %v535 = vpop.f32.mrb[0].mxu0
  %v536 = vadd.f32 %v153, %v535
  %537 = vmatprep.mubr.f32.mxu0 0.0
  %538 = vmatmul.mubr.f32.gmra.mrb[0].mxu0 %v193
  %v539 = vpop.f32.mrb[0].mxu0
  %v540 = vadd.f32 %v158, %v539
  %v541 = vpop.f32.mrb[0].mxu0
  %v542 = vadd.f32 %v158, %v541
  %543 = vmatprep.mubr.f32.mxu0 0.0
  %544 = vmatmul.mubr.f32.gmra.mrb[0].mxu0 %v196
  %v545 = vpop.f32.mrb[0].mxu0
  %v546 = vadd.f32 %v163, %v545
  %v547 = vpop.f32.mrb[0].mxu0
  %v548 = vadd.f32 %v163, %v547
  %549 = vmatprep.mubr.f32.mxu0 0.0
  %550 = vmatmul.mubr.f32.gmra.mrb[0].mxu0 %v199
  %v551 = vpop.f32.mrb[0].mxu0
  %v552 = vadd.f32 %v168, %v551
  %v553 = vpop.f32.mrb[0].mxu0
  %v554 = vadd.f32 %v168, %v553
  %555 = vmatprep.mubr.f32.mxu0 0.0
  %556 = vmatmul.mubr.f32.gmra.mrb[0].mxu0 %v202
  %v557 = vpop.f32.mrb[0].mxu0
  %v558 = vadd.f32 %v173, %v557
  %v559 = vpop.f32.mrb[0].mxu0
  %v560 = vadd.f32 %v173, %v559
  %561 = vmatprep.mubr.f32.mxu0 0.0
  %562 = vmatmul.mubr.f32.gmra.mrb[0].mxu0 %v205
  %v563 = vpop.f32.mrb[0].mxu0
  %v564 = vadd.f32 %v178, %v563
  %v565 = vpop.f32.mrb[0].mxu0
  %v566 = vadd.f32 %v178, %v565
  %567 = vmatprep.mubr.f32.mxu0 0.0
  %568 = vmatmul.mubr.f32.gmra.mrb[0].mxu0 %v208
  %v569 = vpop.f32.mrb[0].mxu0
  %v570 = vadd.f32 %v183, %v569
  %v571 = vpop.f32.mrb[0].mxu0
  %v572 = vadd.f32 %v183, %v571
  %573 = vdwg.mxu0
  %574 = vmatprep.subr.mxu0 %v128
  %575 = vmatpush1.msra.mxu0 %v127
  %576 = vmatprep.subr.mxu0 %v233
  %577 = vmatpush1.msra.mxu0 %v230
  %578 = vmatprep.subr.mxu0 0.0
  %579 = vmatpush1.msra.mxu0 0.0
  %580 = vmatprep.subr.mxu0 0.0
  %581 = vmatpush1.msra.mxu0 0.0
  %582 = vmatprep.subr.mxu0 0.0
  %583 = vmatpush1.msra.mxu0 0.0
  %584 = vmatprep.subr.mxu0 0.0
  %585 = vmatpush1.msra.mxu0 0.0
  %586 = vmatprep.subr.mxu0 0.0
  %587 = vmatpush1.msra.mxu0 0.0
  %588 = vmatprep.subr.mxu0 0.0
  %589 = vmatpush1.msra.mxu0 0.0
  %590 = vmatprep.subr.mxu0 0.0
  %591 = vmatpush1.msra.mxu0 0.0
  %592 = vmatprep.subr.mxu0 0.0
  %593 = vmatpush1.msra.mxu0 0.0
  %594 = vmatprep.subr.mxu0 0.0
  %595 = vmatpush1.msra.mxu0 0.0
  %596 = vmatprep.subr.mxu0 0.0
  %597 = vmatpush1.msra.mxu0 0.0
  %598 = vmatprep.subr.mxu0 0.0
  %599 = vmatpush1.msra.mxu0 0.0
  %600 = vmatprep.subr.mxu0 0.0
  %601 = vmatpush1.msra.mxu0 0.0
  %602 = vmatprep.subr.mxu0 0.0
  %603 = vmatpush1.msra.mxu0 0.0
  %604 = vmatprep.subr.mxu0 0.0
  %605 = vmatpush1.msra.mxu0 0.0
  %606 = vmatprep.subr.mxu0 0.0
  %607 = vmatpush1.msra.mxu0 0.0
  %608 = vmatprep.subr.mxu0 0.0
  %609 = vmatpush1.msra.mxu0 0.0
  %610 = vmatprep.subr.mxu0 0.0
  %611 = vmatpush1.msra.mxu0 0.0
  %612 = vmatprep.subr.mxu0 0.0
  %613 = vmatpush1.msra.mxu0 0.0
  %614 = vmatprep.subr.mxu0 0.0
  %615 = vmatpush1.msra.mxu0 0.0
  %616 = vmatprep.subr.mxu0 0.0
  %617 = vmatpush1.msra.mxu0 0.0
  %618 = vmatprep.subr.mxu0 0.0
  %619 = vmatpush1.msra.mxu0 0.0
  %620 = vmatprep.subr.mxu0 0.0
  %621 = vmatpush1.msra.mxu0 0.0
  %622 = vmatprep.subr.mxu0 0.0
  %623 = vmatpush1.msra.mxu0 0.0
  %624 = vmatprep.subr.mxu0 0.0
  %625 = vmatpush1.msra.mxu0 0.0
  %626 = vmatprep.subr.mxu0 0.0
  %627 = vmatpush1.msra.mxu0 0.0
  %628 = vmatprep.subr.mxu0 0.0
  %629 = vmatpush1.msra.mxu0 0.0
  %630 = vmatprep.subr.mxu0 0.0
  %631 = vmatpush1.msra.mxu0 0.0
  %632 = vmatprep.subr.mxu0 0.0
  %633 = vmatpush1.msra.mxu0 0.0
  %634 = vmatprep.subr.mxu0 0.0
  %635 = vmatpush1.msra.mxu0 0.0
  %636 = vmatprep.subr.mxu0 0.0
  %637 = vmatpush1.msra.mxu0 0.0
  %638 = vmatprep.mubr.f32.mxu0 0.0
  %639 = vmatmul.mubr.f32.gmra.mrb[0].mxu0 %v187
  %v640 = vpop.f32.mrb[0].mxu0
  %v641 = vadd.f32 %v148, %v640
  %v642 = vpop.f32.mrb[0].mxu0
  %v643 = vadd.f32 %v148, %v642
  %644 = vmatprep.mubr.f32.mxu0 0.0
  %645 = vmatmul.mubr.f32.gmra.mrb[0].mxu0 %v190
  %v646 = vpop.f32.mrb[0].mxu0
  %v647 = vadd.f32 %v153, %v646
  %v648 = vpop.f32.mrb[0].mxu0
  %v649 = vadd.f32 %v153, %v648
  %650 = vmatprep.mubr.f32.mxu0 0.0
  %651 = vmatmul.mubr.f32.gmra.mrb[0].mxu0 %v193
  %v652 = vpop.f32.mrb[0].mxu0
  %v653 = vadd.f32 %v158, %v652
  %v654 = vpop.f32.mrb[0].mxu0
  %v655 = vadd.f32 %v158, %v654
  %656 = vmatprep.mubr.f32.mxu0 0.0
  %657 = vmatmul.mubr.f32.gmra.mrb[0].mxu0 %v196
  %v658 = vpop.f32.mrb[0].mxu0
  %v659 = vadd.f32 %v163, %v658
  %v660 = vpop.f32.mrb[0].mxu0
  %v661 = vadd.f32 %v163, %v660
  %662 = vmatprep.mubr.f32.mxu0 0.0
  %663 = vmatmul.mubr.f32.gmra.mrb[0].mxu0 %v199
  %v664 = vpop.f32.mrb[0].mxu0
  %v665 = vadd.f32 %v168, %v664
  %v666 = vpop.f32.mrb[0].mxu0
  %v667 = vadd.f32 %v168, %v666
  %668 = vmatprep.mubr.f32.mxu0 0.0
  %669 = vmatmul.mubr.f32.gmra.mrb[0].mxu0 %v202
  %v670 = vpop.f32.mrb[0].mxu0
  %v671 = vadd.f32 %v173, %v670
  %v672 = vpop.f32.mrb[0].mxu0
  %v673 = vadd.f32 %v173, %v672
  %674 = vmatprep.mubr.f32.mxu0 0.0
  %675 = vmatmul.mubr.f32.gmra.mrb[0].mxu0 %v205
  %v676 = vpop.f32.mrb[0].mxu0
  %v677 = vadd.f32 %v178, %v676
  %v678 = vpop.f32.mrb[0].mxu0
  %v679 = vadd.f32 %v178, %v678
  %680 = vmatprep.mubr.f32.mxu0 0.0
  %681 = vmatmul.mubr.f32.gmra.mrb[0].mxu0 %v208
  %v682 = vpop.f32.mrb[0].mxu0
  %v683 = vadd.f32 %v183, %v682
  %v684 = vpop.f32.mrb[0].mxu0
  %v685 = vadd.f32 %v183, %v684
  %686 = vdwg.mxu0
  %v687 = vmax.f32 %v302, 0.0
  %v688 = vmax.f32 %v304, 0.0
  %v689 = vmax.f32 %v415, 0.0
  %v690 = vmax.f32 %v417, 0.0
  %v691 = vmax.f32 %v528, 0.0
  %v692 = vmax.f32 %v530, 0.0
  %v693 = vmax.f32 %v641, 0.0
  %v694 = vmax.f32 %v643, 0.0
  %v695 = vmax.f32 %v308, 0.0
  %v696 = vmax.f32 %v310, 0.0
  %v697 = vmax.f32 %v421, 0.0
  %v698 = vmax.f32 %v423, 0.0
  %v699 = vmax.f32 %v534, 0.0
  %v700 = vmax.f32 %v536, 0.0
  %v701 = vmax.f32 %v647, 0.0
  %v702 = vmax.f32 %v649, 0.0
  %v703 = vmax.f32 %v314, 0.0
  %v704 = vmax.f32 %v316, 0.0
  %v705 = vmax.f32 %v427, 0.0
  %v706 = vmax.f32 %v429, 0.0
  %v707 = vmax.f32 %v540, 0.0
  %v708 = vmax.f32 %v542, 0.0
  %v709 = vmax.f32 %v653, 0.0
  %v710 = vmax.f32 %v655, 0.0
  %v711 = vmax.f32 %v320, 0.0
  %v712 = vmax.f32 %v322, 0.0
  %v713 = vmax.f32 %v433, 0.0
  %v714 = vmax.f32 %v435, 0.0
  %v715 = vmax.f32 %v546, 0.0
  %v716 = vmax.f32 %v548, 0.0
  %v717 = vmax.f32 %v659, 0.0
  %v718 = vmax.f32 %v661, 0.0
  %v719 = vmax.f32 %v326, 0.0
  %v720 = vmax.f32 %v328, 0.0
  %v721 = vmax.f32 %v439, 0.0
  %v722 = vmax.f32 %v441, 0.0
  %v723 = vmax.f32 %v552, 0.0
  %v724 = vmax.f32 %v554, 0.0
  %v725 = vmax.f32 %v665, 0.0
  %v726 = vmax.f32 %v667, 0.0
  %v727 = vmax.f32 %v332, 0.0
  %v728 = vmax.f32 %v334, 0.0
  %v729 = vmax.f32 %v445, 0.0
  %v730 = vmax.f32 %v447, 0.0
  %v731 = vmax.f32 %v558, 0.0
  %v732 = vmax.f32 %v560, 0.0
  %v733 = vmax.f32 %v671, 0.0
  %v734 = vmax.f32 %v673, 0.0
  %v735 = vmax.f32 %v338, 0.0
  %v736 = vmax.f32 %v340, 0.0
  %v737 = vmax.f32 %v451, 0.0
  %v738 = vmax.f32 %v453, 0.0
  %v739 = vmax.f32 %v564, 0.0
  %v740 = vmax.f32 %v566, 0.0
  %v741 = vmax.f32 %v677, 0.0
  %v742 = vmax.f32 %v679, 0.0
  %v743 = vmax.f32 %v344, 0.0
  %v744 = vmax.f32 %v346, 0.0
  %v745 = vmax.f32 %v457, 0.0
  %v746 = vmax.f32 %v459, 0.0
  %v747 = vmax.f32 %v570, 0.0
  %v748 = vmax.f32 %v572, 0.0
  %v749 = vmax.f32 %v683, 0.0
  %v750 = vmax.f32 %v685, 0.0
  %v751 = vld [vmem:[%s4] sm:$0xff]
  %v752 = vld [vmem:[%s4 + $0x8] sm:$0xff]
  %v753 = vld [vmem:[%s4 + $0x10] sm:$0xff]
  %v754 = vld [vmem:[%s4 + $0x18] sm:$0xff]
  %v755 = vld [vmem:[%s4 + $0x20] sm:$0xff]
  %v756 = vld [vmem:[%s4 + $0x28] sm:$0xff]
  %v757 = vld [vmem:[%s4 + $0x30] sm:$0xff]
  %v758 = vld [vmem:[%s4 + $0x38] sm:$0xff]
  %760 = vset.pattern.permute.xlu0 0
  %761 = vperm.xlu0 %760, %v751
  %v762 = vpop.permute.xlu0 %761
  %765 = vset.pattern.permute.xlu0 0
  %766 = vperm.xlu0 %765, %v752
  %v767 = vpop.permute.xlu0 %766
  %770 = vset.pattern.permute.xlu0 0
  %771 = vperm.xlu0 %770, %v753
  %v772 = vpop.permute.xlu0 %771
  %775 = vset.pattern.permute.xlu0 0
  %776 = vperm.xlu0 %775, %v754
  %v777 = vpop.permute.xlu0 %776
  %780 = vset.pattern.permute.xlu0 0
  %781 = vperm.xlu0 %780, %v755
  %v782 = vpop.permute.xlu0 %781
  %785 = vset.pattern.permute.xlu0 0
  %786 = vperm.xlu0 %785, %v756
  %v787 = vpop.permute.xlu0 %786
  %790 = vset.pattern.permute.xlu0 0
  %791 = vperm.xlu0 %790, %v757
  %v792 = vpop.permute.xlu0 %791
  %795 = vset.pattern.permute.xlu0 0
  %796 = vperm.xlu0 %795, %v758
  %v797 = vpop.permute.xlu0 %796
  %v799 = vmul.f32 %v687, %v762
  %v800 = vmul.f32 %v688, %v762
  %v801 = vmul.f32 %v689, %v762
  %v802 = vmul.f32 %v690, %v762
  %v803 = vmul.f32 %v691, %v762
  %v804 = vmul.f32 %v692, %v762
  %v805 = vmul.f32 %v693, %v762
  %v806 = vmul.f32 %v694, %v762
  %v807 = vmul.f32 %v695, %v767
  %v808 = vmul.f32 %v696, %v767
  %v809 = vmul.f32 %v697, %v767
  %v810 = vmul.f32 %v698, %v767
  %v811 = vmul.f32 %v699, %v767
  %v812 = vmul.f32 %v700, %v767
  %v813 = vmul.f32 %v701, %v767
  %v814 = vmul.f32 %v702, %v767
  %v815 = vmul.f32 %v703, %v772
  %v816 = vmul.f32 %v704, %v772
  %v817 = vmul.f32 %v705, %v772
  %v818 = vmul.f32 %v706, %v772
  %v819 = vmul.f32 %v707, %v772
  %v820 = vmul.f32 %v708, %v772
  %v821 = vmul.f32 %v709, %v772
  %v822 = vmul.f32 %v710, %v772
  %v823 = vmul.f32 %v711, %v777
  %v824 = vmul.f32 %v712, %v777
  %v825 = vmul.f32 %v713, %v777
  %v826 = vmul.f32 %v714, %v777
  %v827 = vmul.f32 %v715, %v777
  %v828 = vmul.f32 %v716, %v777
  %v829 = vmul.f32 %v717, %v777
  %v830 = vmul.f32 %v718, %v777
  %v831 = vmul.f32 %v719, %v782
  %v832 = vmul.f32 %v720, %v782
  %v833 = vmul.f32 %v721, %v782
  %v834 = vmul.f32 %v722, %v782
  %v835 = vmul.f32 %v723, %v782
  %v836 = vmul.f32 %v724, %v782
  %v837 = vmul.f32 %v725, %v782
  %v838 = vmul.f32 %v726, %v782
  %v839 = vmul.f32 %v727, %v787
  %v840 = vmul.f32 %v728, %v787
  %v841 = vmul.f32 %v729, %v787
  %v842 = vmul.f32 %v730, %v787
  %v843 = vmul.f32 %v731, %v787
  %v844 = vmul.f32 %v732, %v787
  %v845 = vmul.f32 %v733, %v787
  %v846 = vmul.f32 %v734, %v787
  %v847 = vmul.f32 %v735, %v792
  %v848 = vmul.f32 %v736, %v792
  %v849 = vmul.f32 %v737, %v792
  %v850 = vmul.f32 %v738, %v792
  %v851 = vmul.f32 %v739, %v792
  %v852 = vmul.f32 %v740, %v792
  %v853 = vmul.f32 %v741, %v792
  %v854 = vmul.f32 %v742, %v792
  %v855 = vmul.f32 %v743, %v797
  %v856 = vmul.f32 %v744, %v797
  %v857 = vmul.f32 %v745, %v797
  %v858 = vmul.f32 %v746, %v797
  %v859 = vmul.f32 %v747, %v797
  %v860 = vmul.f32 %v748, %v797
  %v861 = vmul.f32 %v749, %v797
  %v862 = vmul.f32 %v750, %v797
  %v863 = vadd.f32 %v799, %v807
  %v864 = vadd.f32 %v863, %v815
  %v865 = vadd.f32 %v864, %v823
  %v866 = vadd.f32 %v865, %v831
  %v867 = vadd.f32 %v866, %v839
  %v868 = vadd.f32 %v867, %v847
  %v869 = vadd.f32 %v868, %v855
  %v870 = vrot.slane %v869, 4
  %v871 = vadd.f32 %v869, %v870
  %v872 = vrot.slane %v871, 2
  %v873 = vadd.f32 %v871, %v872
  %v874 = vrot.slane %v873, 1
  %v875 = vadd.f32 %v873, %v874
  %v876 = vadd.f32 %v800, %v808
  %v877 = vadd.f32 %v876, %v816
  %v878 = vadd.f32 %v877, %v824
  %v879 = vadd.f32 %v878, %v832
  %v880 = vadd.f32 %v879, %v840
  %v881 = vadd.f32 %v880, %v848
  %v882 = vadd.f32 %v881, %v856
  %v883 = vrot.slane %v882, 4
  %v884 = vadd.f32 %v882, %v883
  %v885 = vrot.slane %v884, 2
  %v886 = vadd.f32 %v884, %v885
  %v887 = vrot.slane %v886, 1
  %v888 = vadd.f32 %v886, %v887
  %v889 = vadd.f32 %v801, %v809
  %v890 = vadd.f32 %v889, %v817
  %v891 = vadd.f32 %v890, %v825
  %v892 = vadd.f32 %v891, %v833
  %v893 = vadd.f32 %v892, %v841
  %v894 = vadd.f32 %v893, %v849
  %v895 = vadd.f32 %v894, %v857
  %v896 = vrot.slane %v895, 4
  %v897 = vadd.f32 %v895, %v896
  %v898 = vrot.slane %v897, 2
  %v899 = vadd.f32 %v897, %v898
  %v900 = vrot.slane %v899, 1
  %v901 = vadd.f32 %v899, %v900
  %v902 = vadd.f32 %v802, %v810
  %v903 = vadd.f32 %v902, %v818
  %v904 = vadd.f32 %v903, %v826
  %v905 = vadd.f32 %v904, %v834
  %v906 = vadd.f32 %v905, %v842
  %v907 = vadd.f32 %v906, %v850
  %v908 = vadd.f32 %v907, %v858
  %v909 = vrot.slane %v908, 4
  %v910 = vadd.f32 %v908, %v909
  %v911 = vrot.slane %v910, 2
  %v912 = vadd.f32 %v910, %v911
  %v913 = vrot.slane %v912, 1
  %v914 = vadd.f32 %v912, %v913
  %v915 = vadd.f32 %v803, %v811
  %v916 = vadd.f32 %v915, %v819
  %v917 = vadd.f32 %v916, %v827
  %v918 = vadd.f32 %v917, %v835
  %v919 = vadd.f32 %v918, %v843
  %v920 = vadd.f32 %v919, %v851
  %v921 = vadd.f32 %v920, %v859
  %v922 = vrot.slane %v921, 4
  %v923 = vadd.f32 %v921, %v922
  %v924 = vrot.slane %v923, 2
  %v925 = vadd.f32 %v923, %v924
  %v926 = vrot.slane %v925, 1
  %v927 = vadd.f32 %v925, %v926
  %v928 = vadd.f32 %v804, %v812
  %v929 = vadd.f32 %v928, %v820
  %v930 = vadd.f32 %v929, %v828
  %v931 = vadd.f32 %v930, %v836
  %v932 = vadd.f32 %v931, %v844
  %v933 = vadd.f32 %v932, %v852
  %v934 = vadd.f32 %v933, %v860
  %v935 = vrot.slane %v934, 4
  %v936 = vadd.f32 %v934, %v935
  %v937 = vrot.slane %v936, 2
  %v938 = vadd.f32 %v936, %v937
  %v939 = vrot.slane %v938, 1
  %v940 = vadd.f32 %v938, %v939
  %v941 = vadd.f32 %v805, %v813
  %v942 = vadd.f32 %v941, %v821
  %v943 = vadd.f32 %v942, %v829
  %v944 = vadd.f32 %v943, %v837
  %v945 = vadd.f32 %v944, %v845
  %v946 = vadd.f32 %v945, %v853
  %v947 = vadd.f32 %v946, %v861
  %v948 = vrot.slane %v947, 4
  %v949 = vadd.f32 %v947, %v948
  %v950 = vrot.slane %v949, 2
  %v951 = vadd.f32 %v949, %v950
  %v952 = vrot.slane %v951, 1
  %v953 = vadd.f32 %v951, %v952
  %v954 = vadd.f32 %v806, %v814
  %v955 = vadd.f32 %v954, %v822
  %v956 = vadd.f32 %v955, %v830
  %v957 = vadd.f32 %v956, %v838
  %v958 = vadd.f32 %v957, %v846
  %v959 = vadd.f32 %v958, %v854
  %v960 = vadd.f32 %v959, %v862
  %v961 = vrot.slane %v960, 4
  %v962 = vadd.f32 %v960, %v961
  %v963 = vrot.slane %v962, 2
  %v964 = vadd.f32 %v962, %v963
  %v965 = vrot.slane %v964, 1
  %v966 = vadd.f32 %v964, %v965
  %s967 = sld [smem:[#allocation2]]
  %v968 = vstv %s967
  %v969 = vadd.f32 %v875, %v968
  %v970 = vadd.f32 %v888, %v968
  %v971 = vadd.f32 %v901, %v968
  %v972 = vadd.f32 %v914, %v968
  %v973 = vadd.f32 %v927, %v968
  %v974 = vadd.f32 %v940, %v968
  %v975 = vadd.f32 %v953, %v968
  %v976 = vadd.f32 %v966, %v968
  %v977 = vmul.f32 %v969, 1.442695
  %v978 = vpow.pop %v977
  %v979 = vmul.f32 %v970, 1.442695
  %v980 = vpow.pop %v979
  %v981 = vmul.f32 %v971, 1.442695
  %v982 = vpow.pop %v981
  %v983 = vmul.f32 %v972, 1.442695
  %v984 = vpow.pop %v983
  %v985 = vmul.f32 %v973, 1.442695
  %v986 = vpow.pop %v985
  %v987 = vmul.f32 %v974, 1.442695
  %v988 = vpow.pop %v987
  %v989 = vmul.f32 %v975, 1.442695
  %v990 = vpow.pop %v989
  %v991 = vmul.f32 %v976, 1.442695
  %v992 = vpow.pop %v991
  %v993 = vmul.f32 %v978, %v63
  %v994 = vmul.f32 %v980, %v70
  %v995 = vmul.f32 %v982, %v77
  %v996 = vmul.f32 %v984, %v84
  %v997 = vmul.f32 %v986, %v91
  %v998 = vmul.f32 %v988, %v98
  %v999 = vmul.f32 %v990, %v105
  %v1000 = vmul.f32 %v992, %v112
  %v1009 = vcombine.low %v993, %v994
  %v1010 = vcombine.low %v995, %v996
  %v1011 = vcombine.low %v997, %v998
  %v1012 = vcombine.low %v999, %v1000
  %v1014 = vunpack.c.l.s4 1966171168
  %v1015 = vunpack.c.0.s8 %v1014
  %v1016 = vlaneseq
  %v1017 = vshrl.u32 %v1016, 7
  %v1018 = vsub.s32 %v1015, %v1017
  %v1019 = vrot.slane %v1009, %v1018
  %v1021 = vunpack.c.l.s4 1966171168
  %v1022 = vunpack.c.0.s8 %v1021
  %v1023 = vlaneseq
  %v1024 = vshrl.u32 %v1023, 7
  %v1025 = vsub.s32 %v1022, %v1024
  %v1026 = vrot.slane %v1010, %v1025
  %v1028 = vunpack.c.l.s4 1966171168
  %v1029 = vunpack.c.0.s8 %v1028
  %v1030 = vlaneseq
  %v1031 = vshrl.u32 %v1030, 7
  %v1032 = vsub.s32 %v1029, %v1031
  %v1033 = vrot.slane %v1011, %v1032
  %v1035 = vunpack.c.l.s4 1966171168
  %v1036 = vunpack.c.0.s8 %v1035
  %v1037 = vlaneseq
  %v1038 = vshrl.u32 %v1037, 7
  %v1039 = vsub.s32 %v1036, %v1038
  %v1040 = vrot.slane %v1012, %v1039
  %v1041 = vcombine.low %v1019, %v1026
  %v1042 = vcombine.low %v1033, %v1040
  %v1044 = vunpack.c.l.s4 1966171168
  %v1045 = vunpack.c.0.s8 %v1044
  %v1046 = vlaneseq
  %v1047 = vshrl.u32 %v1046, 7
  %v1048 = vsub.s32 %v1045, %v1047
  %v1049 = vrot.slane %v1041, %v1048
  %v1051 = vunpack.c.l.s4 1966171168
  %v1052 = vunpack.c.0.s8 %v1051
  %v1053 = vlaneseq
  %v1054 = vshrl.u32 %v1053, 7
  %v1055 = vsub.s32 %v1052, %v1054
  %v1056 = vrot.slane %v1042, %v1055
  %v1057 = vcombine.low %v1049, %v1056
  %1059 = vst [vmem:[%s6] sm:$0xff] %v1057
  // Predicated region
  $region26: #{ngp_density_field.1} parent=0 // pred_check
    _
  $region27: #{ngp_density_field.1} parent=0 // pred_check_branch
    %1061 = sbr.rel (0) target = $region29
  $region28: #{ngp_density_field.1} parent=0 // pred_region
    _
  $region29: #{ngp_density_field.1} parent=0 // pred_fallthru
    _
  // Predicated region
  $region30: #{ngp_density_field.1} parent=0 // pred_check
    _
  $region31: #{ngp_density_field.1} parent=0 // pred_check_branch
    %1063 = sbr.rel (0) target = $region33
  $region32: #{ngp_density_field.1} parent=0 // pred_region
    _
  $region33: #{ngp_density_field.1} parent=0 // pred_fallthru
    _

</llo_original>
